<compile_context>
chip_gen: v7x
topology: tpu7x:2x2x1
jax: 0.10.0
libtpu: 0.0.40
codegen_flags: <defaults>
</compile_context>

<pallas_src>
import math

import jax
import jax.numpy as jnp
from jax.experimental import pallas as pl
from jax.experimental.pallas import tpu as pltpu

_ROW_CHUNK = 512  # rows per in-kernel compute chunk (bounds f32 temporaries)


def _se_kernel(x_ref, w1_ref, b1_ref, w2_ref, b2_ref, o_ref):
    # x_ref:  (TM, Cp)   row tile of the lane-packed input (streamed)
    # w1_ref: (Cp, Hp)   block-diagonal W1^T, resident across the grid
    # b1_ref: (1, Hp)    f32
    # w2_ref: (Hp, Cp)   block-diagonal W2^T, resident across the grid
    # b2_ref: (1, Cp)    f32
    w1 = w1_ref[...]
    b1 = b1_ref[...]
    w2 = w2_ref[...]
    b2 = b2_ref[...]

    def gate_rows(x):
        # linear_1 + ReLU (MXU matmul, f32 accumulation; VPU max)
        h = jnp.dot(x, w1, preferred_element_type=jnp.float32) + b1
        h = jnp.maximum(h, 0.0)
        # linear_2 + sigmoid (MXU matmul; EUP exp)
        s = jnp.dot(h.astype(w2.dtype), w2, preferred_element_type=jnp.float32) + b2
        s = jax.nn.sigmoid(s)
        # gate in f32, single cast at the store (cheap; avoids bf16 VPU on v5e)
        return (x.astype(jnp.float32) * s).astype(o_ref.dtype)

    tm = x_ref.shape[0]
    if tm > _ROW_CHUNK and tm % _ROW_CHUNK == 0:
        # Chunk the tile so f32 intermediates stay small irrespective of tm.
        n_chunks = tm // _ROW_CHUNK

        def body(c, carry):
            r0 = pl.multiple_of(c * _ROW_CHUNK, _ROW_CHUNK)
            o_ref[pl.ds(r0, _ROW_CHUNK), :] = gate_rows(x_ref[pl.ds(r0, _ROW_CHUNK), :])
            return carry

        jax.lax.fori_loop(0, n_chunks, body, 0, unroll=False)
    else:
        o_ref[...] = gate_rows(x_ref[...])


def _default_tm():
    # v7x (64 MiB VMEM/TC, ~3.2 TB/s HBM) wants larger tiles to amortize the
    # ~0.35 us per-grid-step cost; 4096 packed rows is plenty for v5e/v6e.
    try:
        info = pltpu.get_tpu_info()
        vmem = getattr(info, "vmem_capacity_bytes", None)
        if vmem is not None and int(vmem) <= 96 * 1024 * 1024:
            return 8192
    except Exception:
        pass
    return 4096


def se_block(x, w1, b1, w2, b2, *, tm=None):
    """SEBlock forward.

    x  : (..., C)
    w1 : (H, C)  = linear_1.weight   (H = C // r)
    b1 : (H,)    = linear_1.bias
    w2 : (C, H)  = linear_2.weight
    b2 : (C,)    = linear_2.bias
    tm : row tile in packed rows (default: per-generation choice).
    """
    orig_shape = x.shape
    C = int(orig_shape[-1])
    H = int(w1.shape[0])
    out_dtype = x.dtype
    if tm is None:
        tm = _default_tm()

    # ---- wrapper-side glue (free reshapes only, no full-array copies) ----
    x2 = x.reshape(-1, C)
    M = x2.shape[0]

    # Lane packing: P consecutive tokens per row so the row width is a multiple
    # of 128 lanes (full-lane loads / MXU / stores).
    if C % 128 == 0:
        P = 1
    else:
        lcm = (C * 128) // math.gcd(C, 128)
        P = lcm // C if lcm <= 1024 else 1
    # TODO(synk): if C is not a multiple of 128 and lcm(C,128) > 1024 the P=1
    # fallback leaves lane-masked output stores (correct, just slower).
    Cp, Hp = P * C, P * H

    # Only pad needed: the packing remainder (< P rows), and only if ragged.
    M_pack = -(-M // P) * P
    if M_pack != M:
        x2 = jnp.pad(x2, ((0, M_pack - M), (0, 0)))
    R = M_pack // P
    xp = x2.reshape(R, Cp)

    # Weights: transpose so the kernel does x @ W^T; block-diagonalize if packed.
    wdt = x.dtype
    w1_t = w1.T.astype(wdt)                          # (C, H)
    w2_t = w2.T.astype(wdt)                          # (H, C)
    if P > 1:
        eye = jnp.eye(P, dtype=wdt)
        w1_p = jnp.kron(eye, w1_t)                   # (Cp, Hp) block-diagonal
        w2_p = jnp.kron(eye, w2_t)                   # (Hp, Cp) block-diagonal
        b1_p = jnp.tile(b1.astype(jnp.float32), P).reshape(1, Hp)
        b2_p = jnp.tile(b2.astype(jnp.float32), P).reshape(1, Cp)
    else:
        w1_p, w2_p = w1_t, w2_t
        b1_p = b1.astype(jnp.float32).reshape(1, Hp)
        b2_p = b2.astype(jnp.float32).reshape(1, Cp)

    # Row tile: always aim for >= ~8 grid steps (pipelining + both v7x TCs),
    # dtype-aware sublane rounding, no tile padding (ragged last block is
    # handled by Pallas; OOB writes discarded).
    sub = max(8, 32 // jnp.dtype(x.dtype).itemsize)  # 8 f32 / 16 bf16 / 32 int8
    min_steps = 8
    tm_eff = min(int(tm), -(-R // min_steps))
    if tm_eff >= _ROW_CHUNK:
        tm_eff = (tm_eff // _ROW_CHUNK) * _ROW_CHUNK
    else:
        tm_eff = -(-tm_eff // sub) * sub
    if tm_eff >= R:
        tm_eff = R                                   # tiny input: one full block
    grid = pl.cdiv(R, tm_eff)

    out = pl.pallas_call(
        _se_kernel,
        out_shape=jax.ShapeDtypeStruct((R, Cp), out_dtype),
        grid_spec=pltpu.PrefetchScalarGridSpec(
            num_scalar_prefetch=0,
            grid=(grid,),
            in_specs=[
                pl.BlockSpec((tm_eff, Cp), lambda i: (i, 0)),   # x rows (streamed)
                pl.BlockSpec((Cp, Hp), lambda i: (0, 0)),       # W1^T (resident)
                pl.BlockSpec((1, Hp), lambda i: (0, 0)),        # b1
                pl.BlockSpec((Hp, Cp), lambda i: (0, 0)),       # W2^T (resident)
                pl.BlockSpec((1, Cp), lambda i: (0, 0)),        # b2
            ],
            out_specs=pl.BlockSpec((tm_eff, Cp), lambda i: (i, 0)),
        ),
        compiler_params=pltpu.CompilerParams(
            dimension_semantics=("parallel",),
            vmem_limit_bytes=48 * 1024 * 1024,
        ),
    )(xp, w1_p, b1_p, w2_p, b2_p)

    # Unpack (free reshape); slice only when the packing remainder was padded.
    out = out.reshape(M_pack, C)
    if M_pack != M:
        out = out[:M]
    return out.reshape(orig_shape)


def _reference(x, w1, b1, w2, b2):
    h = jnp.maximum(jnp.einsum("...c,hc->...h", x, w1) + b1, 0.0)
    s = jax.nn.sigmoid(jnp.einsum("...h,ch->...c", h, w2) + b2)
    return x * s


if __name__ == "__main__":
    # Module config: in_ch=32, r=8 -> hidden = 4
    in_ch, r = 32, 8
    hidden = in_ch // r
    batch, seq = 2, 8          # 16 token rows total

    key = jax.random.PRNGKey(0)
    kx, k1, k2, k3, k4, kx2, kx3 = jax.random.split(key, 7)

    x = jax.random.normal(kx, (batch, seq, in_ch), dtype=jnp.float32)

    # Deterministic PyTorch-style uniform(-1/sqrt(fan_in), +1/sqrt(fan_in)) init.
    bound1 = 1.0 / jnp.sqrt(in_ch)
    w1 = jax.random.uniform(k1, (hidden, in_ch), jnp.float32, -bound1, bound1)
    b1 = jax.random.uniform(k2, (hidden,), jnp.float32, -bound1, bound1)
    bound2 = 1.0 / jnp.sqrt(hidden)
    w2 = jax.random.uniform(k3, (in_ch, hidden), jnp.float32, -bound2, bound2)
    b2 = jax.random.uniform(k4, (in_ch,), jnp.float32, -bound2, bound2)

    # 1) Small-shape check (single full-extent block path).
    out = se_block(x, w1, b1, w2, b2)
    out = jax.block_until_ready(out)
    ref = _reference(x, w1, b1, w2, b2)
    assert out.shape == x.shape and out.dtype == x.dtype
    assert jnp.allclose(out, ref, atol=1e-5, rtol=1e-5), "mismatch vs reference (small)"

    # 2) Odd-shape check exercising lane packing, the ragged (clamped) last
    #    grid block and a multi-step grid.
    x_big = jax.random.normal(kx2, (5, 40, in_ch), dtype=jnp.float32)   # M=200 rows
    out_big = se_block(x_big, w1, b1, w2, b2, tm=16)
    out_big = jax.block_until_ready(out_big)
    ref_big = _reference(x_big, w1, b1, w2, b2)
    assert out_big.shape == x_big.shape and out_big.dtype == x_big.dtype
    assert jnp.allclose(out_big, ref_big, atol=1e-5, rtol=1e-5), "mismatch vs reference (tiled)"

    # 3) Medium check exercising the in-kernel 512-row chunk loop (tm_eff>=1024)
    #    plus a ragged last block.
    x_med = jax.random.normal(kx3, (128, 260, in_ch), dtype=jnp.float32)  # M=33280 rows
    out_med = se_block(x_med, w1, b1, w2, b2)
    out_med = jax.block_until_ready(out_med)
    ref_med = _reference(x_med, w1, b1, w2, b2)
    assert out_med.shape == x_med.shape and out_med.dtype == x_med.dtype
    assert jnp.allclose(out_med, ref_med, atol=1e-5, rtol=1e-5), "mismatch vs reference (chunked)"

    print("KERNEL_OK")
</pallas_src>

<mosaic_0001>
module attributes {stable_mosaic.version = 11 : i64} {
  func.func @_se_kernel(%arg0: i32, %arg1: memref<4x128xf32, #tpu.memory_space<vmem>>, %arg2: memref<128x16xf32, #tpu.memory_space<vmem>>, %arg3: memref<1x16xf32, #tpu.memory_space<vmem>>, %arg4: memref<16x128xf32, #tpu.memory_space<vmem>>, %arg5: memref<1x128xf32, #tpu.memory_space<vmem>>, %arg6: memref<4x128xf32, #tpu.memory_space<vmem>>) attributes {dimension_semantics = [#tpu.dimension_semantics<parallel>], iteration_bounds = array<i64: 1>, scalar_prefetch = 0 : i64, scratch_operands = 0 : i64, tpu.core_type = #tpu.core_type<tc>, window_params = [{transform_indices = @transform_0, window_bounds = array<i64: 4, 128>}, {pipeline_mode = #tpu.pipeline_mode<synchronous>, transform_indices = @transform_1, window_bounds = array<i64: 128, 16>}, {pipeline_mode = #tpu.pipeline_mode<synchronous>, transform_indices = @transform_2, window_bounds = array<i64: 1, 16>}, {pipeline_mode = #tpu.pipeline_mode<synchronous>, transform_indices = @transform_3, window_bounds = array<i64: 16, 128>}, {pipeline_mode = #tpu.pipeline_mode<synchronous>, transform_indices = @transform_4, window_bounds = array<i64: 1, 128>}, {transform_indices = @transform_5, window_bounds = array<i64: 4, 128>}]} {
    %c0 = arith.constant 0 : index
    %c0_0 = arith.constant 0 : index
    %0 = vector.load %arg2[%c0, %c0_0] : memref<128x16xf32, #tpu.memory_space<vmem>>, vector<128x16xf32>
    %c0_1 = arith.constant 0 : index
    %c0_2 = arith.constant 0 : index
    %1 = vector.load %arg3[%c0_1, %c0_2] : memref<1x16xf32, #tpu.memory_space<vmem>>, vector<1x16xf32>
    %c0_3 = arith.constant 0 : index
    %c0_4 = arith.constant 0 : index
    %2 = vector.load %arg4[%c0_3, %c0_4] : memref<16x128xf32, #tpu.memory_space<vmem>>, vector<16x128xf32>
    %c0_5 = arith.constant 0 : index
    %c0_6 = arith.constant 0 : index
    %3 = vector.load %arg5[%c0_5, %c0_6] : memref<1x128xf32, #tpu.memory_space<vmem>>, vector<1x128xf32>
    %c0_7 = arith.constant 0 : index
    %c0_8 = arith.constant 0 : index
    %4 = vector.load %arg1[%c0_7, %c0_8] : memref<4x128xf32, #tpu.memory_space<vmem>>, vector<4x128xf32>
    %cst = arith.constant dense<0.000000e+00> : vector<4x16xf32>
    %5 = tpu.matmul %4, %0, %cst {dimension_numbers = #tpu.dot_dimension_numbers<[1], [0], [0], [1], [0, 0, 1, 1], [], []>} : vector<4x128xf32>, vector<128x16xf32>, vector<4x16xf32> -> vector<4x16xf32>
    %6 = vector.broadcast %1 : vector<1x16xf32> to vector<4x16xf32>
    %7 = arith.addf %5, %6 : vector<4x16xf32>
    %cst_9 = arith.constant 0.000000e+00 : f32
    %8 = vector.broadcast %cst_9 : f32 to vector<4x16xf32>
    %9 = arith.maximumf %7, %8 : vector<4x16xf32>
    %cst_10 = arith.constant dense<0.000000e+00> : vector<4x128xf32>
    %10 = tpu.matmul %9, %2, %cst_10 {dimension_numbers = #tpu.dot_dimension_numbers<[1], [0], [0], [1], [0, 0, 1, 1], [], []>} : vector<4x16xf32>, vector<16x128xf32>, vector<4x128xf32> -> vector<4x128xf32>
    %11 = vector.broadcast %3 : vector<1x128xf32> to vector<4x128xf32>
    %12 = arith.addf %10, %11 : vector<4x128xf32>
    %13 = arith.negf %12 : vector<4x128xf32>
    %14 = math.exp %13 : vector<4x128xf32>
    %cst_11 = arith.constant 1.000000e+00 : f32
    %15 = vector.broadcast %cst_11 : f32 to vector<4x128xf32>
    %16 = arith.addf %15, %14 : vector<4x128xf32>
    %17 = arith.divf %15, %16 : vector<4x128xf32>
    %18 = arith.mulf %4, %17 : vector<4x128xf32>
    %c0_12 = arith.constant 0 : index
    %c0_13 = arith.constant 0 : index
    %19 = vector.load %arg6[%c0_12, %c0_13] : memref<4x128xf32, #tpu.memory_space<vmem>>, vector<4x128xf32>
    tpu.vector_store %arg6[%c0_12, %c0_13], %18 {strides = array<i32>} : memref<4x128xf32, #tpu.memory_space<vmem>>, vector<4x128xf32>,
    return
  }
  func.func @transform_0(%arg0: i32) -> (i32, i32) {
    %c0_i32 = arith.constant 0 : i32
    %c0_i32_0 = arith.constant 0 : i32
    return %arg0, %c0_i32 : i32, i32
  }
  func.func @transform_1(%arg0: i32) -> (i32, i32) {
    %c0_i32 = arith.constant 0 : i32
    %c0_i32_0 = arith.constant 0 : i32
    %c0_i32_1 = arith.constant 0 : i32
    return %c0_i32, %c0_i32_0 : i32, i32
  }
  func.func @transform_2(%arg0: i32) -> (i32, i32) {
    %c0_i32 = arith.constant 0 : i32
    %c0_i32_0 = arith.constant 0 : i32
    %c0_i32_1 = arith.constant 0 : i32
    return %c0_i32, %c0_i32_0 : i32, i32
  }
  func.func @transform_3(%arg0: i32) -> (i32, i32) {
    %c0_i32 = arith.constant 0 : i32
    %c0_i32_0 = arith.constant 0 : i32
    %c0_i32_1 = arith.constant 0 : i32
    return %c0_i32, %c0_i32_0 : i32, i32
  }
  func.func @transform_4(%arg0: i32) -> (i32, i32) {
    %c0_i32 = arith.constant 0 : i32
    %c0_i32_0 = arith.constant 0 : i32
    %c0_i32_1 = arith.constant 0 : i32
    return %c0_i32, %c0_i32_0 : i32, i32
  }
  func.func @transform_5(%arg0: i32) -> (i32, i32) {
    %c0_i32 = arith.constant 0 : i32
    %c0_i32_0 = arith.constant 0 : i32
    return %arg0, %c0_i32 : i32, i32
  }
}

</mosaic_0001>

<llo_original>
// kernel: tpu_custom_call.1
$region0: #{tpu_custom_call.1}
  #allocation0 [shape = 'u32[]', space=smem, size = 0x4, offset = 0x4, fixed_abs, tag = 'smem constant byte address 0x4 - core index']
  #allocation1 [shape = 'u32[144,128]{1,0:T(1,128)}', space=vmem, size = 0x12000, scoped, tag = 'internal scratch']
  %s0 = inlined_call_operand.vmem [shape: f32[4,128], index: 0, kind: input, shape index: {}]
  %s1 = inlined_call_operand.vmem [shape: f32[128,16], index: 1, kind: input, shape index: {}]
  %s2 = inlined_call_operand.vmem [shape: f32[1,16], index: 2, kind: input, shape index: {}]
  %s3 = inlined_call_operand.vmem [shape: f32[16,128], index: 3, kind: input, shape index: {}]
  %s4 = inlined_call_operand.vmem [shape: f32[1,128], index: 4, kind: input, shape index: {}]
  %s5 = inlined_call_operand.hbm [shape: f32[4,128], index: 5, kind: output, shape index: {}]
  %s6 = sld [smem:[#allocation0]]
  $region30: #{tpu_custom_call.1} parent=0
    _
  %s8 = ssub.s32 1, %s6
  %s9 = scalar_select 0, %s8, %s6
  $region1: #{tpu_custom_call.1} parent=0
    #allocation2 [shape = 'u8[2048]{0}', space=vmem, size = 0x800, scoped, tag = 'output window, operand 0, single buffered']
    #allocation3 [shape = 's32[1]{0}', space=sflag, size = 0x4, scoped, tag = 'scoped memory for tpu_custom_call.1']
    %10 = vsyncpa [#allocation3], 0
    // Predicated region
    $region2: #{tpu_custom_call.1} parent=1 // pred_check
      _
    $region3: #{tpu_custom_call.1} parent=1 // pred_check_branch
      %12 = sbr.rel (0) target = $region5
    $region4: #{tpu_custom_call.1} parent=1 // pred_region
      _
    $region5: #{tpu_custom_call.1} parent=1 // pred_fallthru
      _
    // Predicated region
    $region6: #{tpu_custom_call.1} parent=1 // pred_check
      _
    $region7: #{tpu_custom_call.1} parent=1 // pred_check_branch
      %14 = sbr.rel (0) target = $region9
    $region8: #{tpu_custom_call.1} parent=1 // pred_region
      _
    $region9: #{tpu_custom_call.1} parent=1 // pred_fallthru
      _
    // Predicated region
    $region10: #{tpu_custom_call.1} parent=1 // pred_check
      _
    $region11: #{tpu_custom_call.1} parent=1 // pred_check_branch
      %16 = sbr.rel (0) target = $region13
    $region12: #{tpu_custom_call.1} parent=1 // pred_region
      _
    $region13: #{tpu_custom_call.1} parent=1 // pred_fallthru
      _
    // Predicated region
    $region14: #{tpu_custom_call.1} parent=1 // pred_check
      _
    $region15: #{tpu_custom_call.1} parent=1 // pred_check_branch
      %18 = sbr.rel (0) target = $region17
    $region16: #{tpu_custom_call.1} parent=1 // pred_region
      _
    $region17: #{tpu_custom_call.1} parent=1 // pred_fallthru
      _
    // Predicated region
    $region18: #{tpu_custom_call.1} parent=1 // pred_check
      _
    $region19: #{tpu_custom_call.1} parent=1 // pred_check_branch
      %20 = sbr.rel (0) target = $region21
    $region20: #{tpu_custom_call.1} parent=1 // pred_region
      _
    $region21: #{tpu_custom_call.1} parent=1 // pred_fallthru
      _
    %v21 = vld [vmem:[%s1] sm:$0xff]
    %v22 = vld [vmem:[%s1 + $0x8] sm:$0xff]
    %v23 = vld [vmem:[%s1 + $0x10] sm:$0xff]
    %v24 = vld [vmem:[%s1 + $0x18] sm:$0xff]
    %v25 = vld [vmem:[%s1 + $0x20] sm:$0xff]
    %v26 = vld [vmem:[%s1 + $0x28] sm:$0xff]
    %v27 = vld [vmem:[%s1 + $0x30] sm:$0xff]
    %v28 = vld [vmem:[%s1 + $0x38] sm:$0xff]
    %v29 = vld [vmem:[%s1 + $0x40] sm:$0xff]
    %v30 = vld [vmem:[%s1 + $0x48] sm:$0xff]
    %v31 = vld [vmem:[%s1 + $0x50] sm:$0xff]
    %v32 = vld [vmem:[%s1 + $0x58] sm:$0xff]
    %v33 = vld [vmem:[%s1 + $0x60] sm:$0xff]
    %v34 = vld [vmem:[%s1 + $0x68] sm:$0xff]
    %v35 = vld [vmem:[%s1 + $0x70] sm:$0xff]
    %v36 = vld [vmem:[%s1 + $0x78] sm:$0xff]
    %v37 = vld [vmem:[%s2] sm:$0x1]
    %v38 = vld [vmem:[%s3] sm:$0xff]
    %v39 = vld [vmem:[%s3 + $0x8] sm:$0xff]
    %v40 = vld [vmem:[%s4] sm:$0x1]
    %v41 = vld [vmem:[%s0] sm:$0xf]
    %v43 = vlaneseq
    %v44 = vshrl.u32 %v43, 7
    %v45 = vsub.s32 0, %v44
    %v46 = vrot.slane %v37, %v45
    %48 = vmatprep.subr.mxu0 0.0
    %49 = vmatpush1.msra.mxu0 %v21
    %50 = vmatprep.subr.mxu0 0.0
    %51 = vmatpush1.msra.mxu0 %v22
    %52 = vmatprep.subr.mxu0 0.0
    %53 = vmatpush1.msra.mxu0 %v23
    %54 = vmatprep.subr.mxu0 0.0
    %55 = vmatpush1.msra.mxu0 %v24
    %56 = vmatprep.subr.mxu0 0.0
    %57 = vmatpush1.msra.mxu0 %v25
    %58 = vmatprep.subr.mxu0 0.0
    %59 = vmatpush1.msra.mxu0 %v26
    %60 = vmatprep.subr.mxu0 0.0
    %61 = vmatpush1.msra.mxu0 %v27
    %62 = vmatprep.subr.mxu0 0.0
    %63 = vmatpush1.msra.mxu0 %v28
    %64 = vmatprep.subr.mxu0 0.0
    %65 = vmatpush1.msra.mxu0 %v29
    %66 = vmatprep.subr.mxu0 0.0
    %67 = vmatpush1.msra.mxu0 %v30
    %68 = vmatprep.subr.mxu0 0.0
    %69 = vmatpush1.msra.mxu0 %v31
    %70 = vmatprep.subr.mxu0 0.0
    %71 = vmatpush1.msra.mxu0 %v32
    %72 = vmatprep.subr.mxu0 0.0
    %73 = vmatpush1.msra.mxu0 %v33
    %74 = vmatprep.subr.mxu0 0.0
    %75 = vmatpush1.msra.mxu0 %v34
    %76 = vmatprep.subr.mxu0 0.0
    %77 = vmatpush1.msra.mxu0 %v35
    %78 = vmatprep.subr.mxu0 0.0
    %79 = vmatpush1.msra.mxu0 %v36
    %80 = vmatprep.subr.mxu0 0.0
    %81 = vmatpush1.msra.mxu0 0.0
    %82 = vmatprep.subr.mxu0 0.0
    %83 = vmatpush1.msra.mxu0 0.0
    %84 = vmatprep.subr.mxu0 0.0
    %85 = vmatpush1.msra.mxu0 0.0
    %86 = vmatprep.subr.mxu0 0.0
    %87 = vmatpush1.msra.mxu0 0.0
    %88 = vmatprep.subr.mxu0 0.0
    %89 = vmatpush1.msra.mxu0 0.0
    %90 = vmatprep.subr.mxu0 0.0
    %91 = vmatpush1.msra.mxu0 0.0
    %92 = vmatprep.subr.mxu0 0.0
    %93 = vmatpush1.msra.mxu0 0.0
    %94 = vmatprep.subr.mxu0 0.0
    %95 = vmatpush1.msra.mxu0 0.0
    %96 = vmatprep.subr.mxu0 0.0
    %97 = vmatpush1.msra.mxu0 0.0
    %98 = vmatprep.subr.mxu0 0.0
    %99 = vmatpush1.msra.mxu0 0.0
    %100 = vmatprep.subr.mxu0 0.0
    %101 = vmatpush1.msra.mxu0 0.0
    %102 = vmatprep.subr.mxu0 0.0
    %103 = vmatpush1.msra.mxu0 0.0
    %104 = vmatprep.subr.mxu0 0.0
    %105 = vmatpush1.msra.mxu0 0.0
    %106 = vmatprep.subr.mxu0 0.0
    %107 = vmatpush1.msra.mxu0 0.0
    %108 = vmatprep.subr.mxu0 0.0
    %109 = vmatpush1.msra.mxu0 0.0
    %110 = vmatprep.subr.mxu0 0.0
    %111 = vmatpush1.msra.mxu0 0.0
    %112 = vmatprep.mubr.f32.mxu0 0.0
    %113 = vmatmul.mubr.f32.gmra.mrb[0].mxu0 %v41
    %v114 = vpop.f32.mrb[0].mxu0
    %v115 = vadd.f32 %v46, %v114
    %v116 = vpop.f32.mrb[0].mxu0
    %117 = vdwg.mxu0
    %v118 = vmax.f32 %v115, 0.0
    %v120 = vlaneseq
    %v121 = vshrl.u32 %v120, 7
    %v122 = vsub.s32 0, %v121
    %v123 = vrot.slane %v40, %v122
    %vm125 = vcmask 130048
    %v127 = vsel %vm125, %v118, 0
    %129 = vmatprep.subr.mxu0 0.0
    %130 = vmatpush1.msra.mxu0 %v38
    %131 = vmatprep.subr.mxu0 0.0
    %132 = vmatpush1.msra.mxu0 %v39
    %133 = vmatprep.subr.mxu0 0.0
    %134 = vmatpush1.msra.mxu0 0.0
    %135 = vmatprep.subr.mxu0 0.0
    %136 = vmatpush1.msra.mxu0 0.0
    %137 = vmatprep.subr.mxu0 0.0
    %138 = vmatpush1.msra.mxu0 0.0
    %139 = vmatprep.subr.mxu0 0.0
    %140 = vmatpush1.msra.mxu0 0.0
    %141 = vmatprep.subr.mxu0 0.0
    %142 = vmatpush1.msra.mxu0 0.0
    %143 = vmatprep.subr.mxu0 0.0
    %144 = vmatpush1.msra.mxu0 0.0
    %145 = vmatprep.subr.mxu0 0.0
    %146 = vmatpush1.msra.mxu0 0.0
    %147 = vmatprep.subr.mxu0 0.0
    %148 = vmatpush1.msra.mxu0 0.0
    %149 = vmatprep.subr.mxu0 0.0
    %150 = vmatpush1.msra.mxu0 0.0
    %151 = vmatprep.subr.mxu0 0.0
    %152 = vmatpush1.msra.mxu0 0.0
    %153 = vmatprep.subr.mxu0 0.0
    %154 = vmatpush1.msra.mxu0 0.0
    %155 = vmatprep.subr.mxu0 0.0
    %156 = vmatpush1.msra.mxu0 0.0
    %157 = vmatprep.subr.mxu0 0.0
    %158 = vmatpush1.msra.mxu0 0.0
    %159 = vmatprep.subr.mxu0 0.0
    %160 = vmatpush1.msra.mxu0 0.0
    %161 = vmatprep.subr.mxu0 0.0
    %162 = vmatpush1.msra.mxu0 0.0
    %163 = vmatprep.subr.mxu0 0.0
    %164 = vmatpush1.msra.mxu0 0.0
    %165 = vmatprep.subr.mxu0 0.0
    %166 = vmatpush1.msra.mxu0 0.0
    %167 = vmatprep.subr.mxu0 0.0
    %168 = vmatpush1.msra.mxu0 0.0
    %169 = vmatprep.subr.mxu0 0.0
    %170 = vmatpush1.msra.mxu0 0.0
    %171 = vmatprep.subr.mxu0 0.0
    %172 = vmatpush1.msra.mxu0 0.0
    %173 = vmatprep.subr.mxu0 0.0
    %174 = vmatpush1.msra.mxu0 0.0
    %175 = vmatprep.subr.mxu0 0.0
    %176 = vmatpush1.msra.mxu0 0.0
    %177 = vmatprep.subr.mxu0 0.0
    %178 = vmatpush1.msra.mxu0 0.0
    %179 = vmatprep.subr.mxu0 0.0
    %180 = vmatpush1.msra.mxu0 0.0
    %181 = vmatprep.subr.mxu0 0.0
    %182 = vmatpush1.msra.mxu0 0.0
    %183 = vmatprep.subr.mxu0 0.0
    %184 = vmatpush1.msra.mxu0 0.0
    %185 = vmatprep.subr.mxu0 0.0
    %186 = vmatpush1.msra.mxu0 0.0
    %187 = vmatprep.subr.mxu0 0.0
    %188 = vmatpush1.msra.mxu0 0.0
    %189 = vmatprep.subr.mxu0 0.0
    %190 = vmatpush1.msra.mxu0 0.0
    %191 = vmatprep.subr.mxu0 0.0
    %192 = vmatpush1.msra.mxu0 0.0
    %193 = vmatprep.mubr.f32.mxu0 0.0
    %194 = vmatmul.mubr.f32.gmra.mrb[0].mxu0 %v127
    %v195 = vpop.f32.mrb[0].mxu0
    %v196 = vadd.f32 %v123, %v195
    %v197 = vpop.f32.mrb[0].mxu0
    %198 = vdwg.mxu0
    %v199 = vxor.u32 %v196, 2147483648
    %v200 = vmul.f32 %v199, 1.442695
    %v201 = vpow.pop %v200
    %v202 = vadd.f32 %v201, 1.0
    %v203 = vrcp.pop %v202
    %v204 = vmul.f32 1.0, %v203
    %v205 = vmul.f32 %v41, %v204
    %206 = vst [vmem:[#allocation2] sm:$0xf] %v205
    // Predicated region
    $region22: #{tpu_custom_call.1} parent=1 // pred_check
      _
    $region23: #{tpu_custom_call.1} parent=1 // pred_check_branch
      %208 = sbr.rel (0) target = $region25
    $region24: #{tpu_custom_call.1} parent=1 // pred_region
      %s210 = ssub.s32 64, 64
      %211 = vsyncadd [#allocation3], %s210
      %s213 = sshll.u32 [#allocation2], 4
      %s214 = int_to_ptr.vmem [resolvable:$true] %s213
      %216 = dma.vmem_to_hbm [thread:$0]  %s214, 64, %s5, [#allocation3]
    $region25: #{tpu_custom_call.1} parent=1 // pred_fallthru
      _
    // Predicated region
    $region26: #{tpu_custom_call.1} parent=1 // pred_check
      _
    $region27: #{tpu_custom_call.1} parent=1 // pred_check_branch
      %218 = sbr.rel (0) target = $region29
    $region28: #{tpu_custom_call.1} parent=1 // pred_region
      %219 = dma.done [#allocation3], 64
    $region29: #{tpu_custom_call.1} parent=1 // pred_fallthru
      _
    %220 = vsyncpa [#allocation3], 1

</llo_original>
